<compile_context>
chip_gen: v7x
topology: tpu7x:2x2x1
jax: 0.10.0
libtpu: 0.0.40
codegen_flags: <defaults>
</compile_context>

<pallas_src>
import functools

import numpy as np
import jax
import jax.numpy as jnp
from jax.experimental import pallas as pl
from jax.experimental.pallas import tpu as pltpu


# Per-grid-step VMEM footprint budget (bytes). The estimates below already
# include the 2x double-buffering of inputs and output (factor 4 on raw block
# bytes), so 16 MiB stays well inside the 32 MiB scoped limit requested below.
_VMEM_STEP_BUDGET = 16 * 1024 * 1024
_VMEM_LIMIT_BYTES = 32 * 1024 * 1024
# Aim for at least this many grid steps on problems worth pipelining.
_MIN_PIPELINE_STEPS = 4
# Below this total size the ~0.35us/step overhead outweighs pipelining.
_SPLIT_MIN_BYTES = 256 * 1024
# Above this total size go straight to the HBM->HBM pure-DMA path.
_DMA_PATH_MIN_BYTES = 64 * 1024 * 1024


def _cdiv(a, b):
    return -(-a // b)


def _rdown(x, m):
    return (x // m) * m


def _pick_rows(extent, row_bytes, budget, min_steps, mult):
    """Block size for a second-minor (sublane) axis.

    Returns a multiple of `mult` (sublane packing) or `extent` itself, sized to
    `budget`; shrinks to give >= min_steps grid steps when the axis allows it.
    Returns None when even the smallest legal block busts the budget.
    """
    row_bytes = max(int(row_bytes), 1)
    if extent <= mult:
        return extent if extent * row_bytes <= budget else None
    max_rows = budget // row_bytes
    if max_rows < mult:
        return None
    cap = extent if extent % mult == 0 else _rdown(extent, mult)
    nb = min(_rdown(max_rows, mult), cap)
    while nb > mult and _cdiv(extent, nb) < min(min_steps, _cdiv(extent, mult)):
        nb = max(mult, _rdown(nb // 2, mult))
    return nb


def _pick_outer(extent, item_bytes, budget, min_steps):
    """Block size for an axis outside the minor-two dims (any integer >= 1)."""
    item_bytes = max(int(item_bytes), 1)
    nb = max(min(budget // item_bytes, extent), 1)
    while nb > 1 and _cdiv(extent, nb) < min(min_steps, extent):
        nb = _cdiv(nb, 2)
    return nb


# --------------------------------------------------------------------------- #
# Kernels (all are pure placement copies at static offsets).
# --------------------------------------------------------------------------- #
def _concat_lanes_kernel(*refs, offsets, sizes):
    """2-D blocks; concat along the lane (minor) axis at static lane offsets."""
    in_refs, o_ref = refs[:-1], refs[-1]
    for r, off, w in zip(in_refs, offsets, sizes):
        o_ref[:, off:off + w] = r[...]


def _concat_4d_kernel(*refs, offsets, sizes):
    """(nb, c_i, to, 128) blocks -> (nb, c_total, to, 128) block.

    The concat axis sits outside the minor (sublane, lane) dims, so every
    per-input store writes whole (to, 128) tiles: full-width unmasked vst.
    """
    in_refs, o_ref = refs[:-1], refs[-1]
    for r, off, c in zip(in_refs, offsets, sizes):
        o_ref[:, off:off + c, :, :] = r[...]


def _concat_3d_kernel(*refs, offsets, sizes):
    """(nb, c_i, tl) blocks -> (nb, c_total, tl); fallback for unaligned trails."""
    in_refs, o_ref = refs[:-1], refs[-1]
    for r, off, c in zip(in_refs, offsets, sizes):
        o_ref[:, off:off + c, :] = r[...]


def _concat_dma_kernel(*refs, offsets, sizes):
    """Pure HBM->HBM concat: one rectangular async copy per input, no VMEM."""
    n = len(sizes)
    in_refs, o_ref, sems = refs[:n], refs[n], refs[n + 1]
    copies = []
    for idx, (r, off, c) in enumerate(zip(in_refs, offsets, sizes)):
        cp = pltpu.make_async_copy(r, o_ref.at[:, off:off + c, :], sems.at[idx])
        cp.start()
        copies.append(cp)
    for cp in copies:
        cp.wait()


# --------------------------------------------------------------------------- #
# Wrapper
# --------------------------------------------------------------------------- #
def pallas_concat(xs, dimension=1, *, force_dma=None):
    """jnp.concatenate(xs, axis=dimension) implemented with Pallas TPU kernels."""
    xs = list(xs)
    assert xs, "Concat needs at least one input"
    nd = xs[0].ndim
    assert nd >= 1, "Concat inputs must have rank >= 1"
    d = dimension % nd
    dtype = xs[0].dtype
    for x in xs:
        assert x.dtype == dtype, "all inputs must share a dtype"
        assert x.shape[:d] == xs[0].shape[:d] and x.shape[d + 1:] == xs[0].shape[d + 1:], (
            "all inputs must match on non-concat dims")

    out_shape_full = (xs[0].shape[:d]
                      + (int(sum(int(x.shape[d]) for x in xs)),)
                      + xs[0].shape[d + 1:])

    # Zero-width inputs would produce zero-extent BlockSpecs; drop them.
    xs = [x for x in xs if int(x.shape[d]) > 0]
    if not xs:
        return jnp.zeros(out_shape_full, dtype)
    if len(xs) == 1:
        return xs[0].reshape(out_shape_full)

    lead = int(np.prod(xs[0].shape[:d], dtype=np.int64)) if d > 0 else 1
    trail = int(np.prod(xs[0].shape[d + 1:], dtype=np.int64)) if d + 1 < nd else 1
    sizes = [int(x.shape[d]) for x in xs]
    offsets = [int(v) for v in np.cumsum([0] + sizes[:-1])]
    c_total = int(sum(sizes))
    n = len(xs)
    itemsize = jnp.dtype(dtype).itemsize
    total_bytes = lead * c_total * trail * itemsize
    if total_bytes == 0:
        return jnp.zeros(out_shape_full, dtype)

    # Pure-copy kernel: tell XLA's scheduler it is bandwidth, not compute.
    cost = pl.CostEstimate(flops=0, transcendentals=0, bytes_accessed=2 * total_bytes)
    # Sublane packing multiple for this dtype (8 for f32, 16 for bf16, 32 int8).
    sub_mult = max(8, 32 // max(itemsize, 1))
    want_steps = _MIN_PIPELINE_STEPS if total_bytes >= _SPLIT_MIN_BYTES else 1

    # ---------------- Path 0: huge tensors -> pure HBM->HBM DMA ------------- #
    use_dma = force_dma if force_dma is not None else total_bytes >= _DMA_PATH_MIN_BYTES
    if use_dma:
        xs3 = [x.reshape(lead, c, trail) for x, c in zip(xs, sizes)]
        kern = functools.partial(_concat_dma_kernel, offsets=offsets, sizes=sizes)
        out = pl.pallas_call(
            kern,
            out_shape=jax.ShapeDtypeStruct((lead, c_total, trail), dtype),
            in_specs=[pl.BlockSpec(memory_space=pl.ANY)] * n,
            out_specs=pl.BlockSpec(memory_space=pl.ANY),
            scratch_shapes=[pltpu.SemaphoreType.DMA((n,))],
            compiler_params=pltpu.CompilerParams(has_side_effects=True),
            cost_estimate=cost,
        )(*xs3)
        return out.reshape(out_shape_full)

    # ---------------- Path 1: fold the concat axis into the lane axis ------- #
    # trail == 1       : the concat axis already is the minor axis.
    # trail % 128 == 0 : reshape to (lead, c_i*trail); lane offsets off_i*trail
    #                    are 128-aligned -> every store is an unmasked vst.
    lane_fold = trail == 1 or trail % 128 == 0
    nb_fold = None
    if lane_fold:
        lane_sizes = [c * trail for c in sizes]
        lane_offsets = [o * trail for o in offsets]
        lane_total = c_total * trail
        nb_fold = _pick_rows(lead, 4 * lane_total * itemsize, _VMEM_STEP_BUDGET,
                             want_steps, sub_mult)

    # 4-D path is preferred when `lead` alone cannot provide VMEM-sized,
    # pipelined blocks but the (lane-aligned) spatial extent can.
    t_outer = trail // 128 if (trail > 1 and trail % 128 == 0) else 0
    use_4d = (t_outer >= sub_mult
              and (nb_fold is None or _cdiv(lead, nb_fold) < want_steps))

    if (trail == 1 or (lane_fold and nb_fold is not None)) and not use_4d:
        nb = nb_fold if nb_fold is not None else min(lead, sub_mult)
        xs2 = [x.reshape(lead, w) for x, w in zip(xs, lane_sizes)]
        kern = functools.partial(_concat_lanes_kernel,
                                 offsets=lane_offsets, sizes=lane_sizes)
        out = pl.pallas_call(
            kern,
            out_shape=jax.ShapeDtypeStruct((lead, lane_total), dtype),
            grid_spec=pltpu.PrefetchScalarGridSpec(
                num_scalar_prefetch=0,
                grid=(_cdiv(lead, nb),),
                in_specs=[pl.BlockSpec((nb, w), lambda i: (i, 0)) for w in lane_sizes],
                out_specs=pl.BlockSpec((nb, lane_total), lambda i: (i, 0)),
            ),
            compiler_params=pltpu.CompilerParams(
                dimension_semantics=("parallel",),
                vmem_limit_bytes=_VMEM_LIMIT_BYTES),
            cost_estimate=cost,
        )(*xs2)
        return out.reshape(out_shape_full)

    if use_4d:
        # (lead, c_i, t_outer, 128): sublane axis is spatial -> aligned stores,
        # and the spatial axis is tiled for pipelining even at batch size 1.
        unit = 4 * c_total * 128 * itemsize  # bytes per (lead-row, t_outer-row)
        to_tile = _pick_rows(t_outer, unit, _VMEM_STEP_BUDGET, 1, sub_mult)
        if to_tile is None:
            to_tile = min(t_outer, sub_mult)
        nb = max(min(_VMEM_STEP_BUDGET // (unit * to_tile), lead), 1)
        # Guarantee a few grid steps for fetch/writeback overlap.
        while _cdiv(lead, nb) * _cdiv(t_outer, to_tile) < want_steps and nb > 1:
            nb = _cdiv(nb, 2)
        while (_cdiv(lead, nb) * _cdiv(t_outer, to_tile) < want_steps
               and to_tile > sub_mult):
            to_tile = max(sub_mult, _rdown(to_tile // 2, sub_mult))
        xs4 = [x.reshape(lead, c, t_outer, 128) for x, c in zip(xs, sizes)]
        kern = functools.partial(_concat_4d_kernel, offsets=offsets, sizes=sizes)
        out = pl.pallas_call(
            kern,
            out_shape=jax.ShapeDtypeStruct((lead, c_total, t_outer, 128), dtype),
            grid_spec=pltpu.PrefetchScalarGridSpec(
                num_scalar_prefetch=0,
                grid=(_cdiv(lead, nb), _cdiv(t_outer, to_tile)),
                in_specs=[pl.BlockSpec((nb, c, to_tile, 128),
                                       lambda i, j: (i, 0, j, 0)) for c in sizes],
                out_specs=pl.BlockSpec((nb, c_total, to_tile, 128),
                                       lambda i, j: (i, 0, j, 0)),
            ),
            compiler_params=pltpu.CompilerParams(
                dimension_semantics=("parallel", "parallel"),
                vmem_limit_bytes=_VMEM_LIMIT_BYTES),
            cost_estimate=cost,
        )(*xs4)
        return out.reshape(out_shape_full)

    # ---------------- Path 2: fallback for non-lane-aligned trails ---------- #
    # (lead, c_i, trail) with the trail tiled in 128-lane multiples. Stores
    # land at static sublane channel offsets (masked only when c_i % 8 != 0).
    if 4 * c_total * trail * itemsize <= _VMEM_STEP_BUDGET or trail < 128:
        tl = trail
    else:
        tl = _rdown(_VMEM_STEP_BUDGET // (4 * c_total * itemsize), 128)
        tl = min(max(tl, 128), _rdown(trail, 128))
    lane_steps = _cdiv(trail, tl)
    nb = _pick_outer(lead, 4 * c_total * tl * itemsize, _VMEM_STEP_BUDGET,
                     _cdiv(want_steps, lane_steps))
    xs3 = [x.reshape(lead, c, trail) for x, c in zip(xs, sizes)]
    kern = functools.partial(_concat_3d_kernel, offsets=offsets, sizes=sizes)
    out = pl.pallas_call(
        kern,
        out_shape=jax.ShapeDtypeStruct((lead, c_total, trail), dtype),
        grid_spec=pltpu.PrefetchScalarGridSpec(
            num_scalar_prefetch=0,
            grid=(_cdiv(lead, nb), lane_steps),
            in_specs=[pl.BlockSpec((nb, c, tl), lambda i, j: (i, 0, j)) for c in sizes],
            out_specs=pl.BlockSpec((nb, c_total, tl), lambda i, j: (i, 0, j)),
        ),
        compiler_params=pltpu.CompilerParams(
            dimension_semantics=("parallel", "parallel"),
            vmem_limit_bytes=_VMEM_LIMIT_BYTES),
        cost_estimate=cost,
    )(*xs3)
    return out.reshape(out_shape_full)


class Concat:
    """Pallas equivalent of ultralytics Concat: concatenate a list of tensors."""

    def __init__(self, dimension=1):
        self.d = dimension

    def __call__(self, x):
        return pallas_concat(x, self.d)


if __name__ == "__main__":
    key = jax.random.PRNGKey(0)
    k1, k2, k3, k4, k5, k6, k7, k8, k9 = jax.random.split(key, 9)

    # 1) Typical YOLO channel concat (NCHW, dim=1); trail = 256 -> lane-fold path.
    x1 = jax.random.normal(k1, (2, 4, 16, 16), dtype=jnp.float32)
    x2 = jax.random.normal(k2, (2, 6, 16, 16), dtype=jnp.float32)
    x3 = jax.random.normal(k3, (2, 2, 16, 16), dtype=jnp.float32)
    concat = Concat(1)
    y = concat([x1, x2, x3])
    jax.block_until_ready(y)
    ref = jnp.concatenate([x1, x2, x3], axis=1)
    assert y.shape == ref.shape and bool(jnp.array_equal(y, ref)), "dim=1 concat mismatch"

    # 2) Last-axis concat (lane-concat path, concat axis already minor).
    a = jax.random.normal(k4, (2, 8, 16), dtype=jnp.float32)
    b = jax.random.normal(k5, (2, 8, 32), dtype=jnp.float32)
    y2 = pallas_concat([a, b], dimension=-1)
    assert bool(jnp.array_equal(y2, jnp.concatenate([a, b], axis=-1))), "last-axis mismatch"

    # 3) Non-lane-aligned trailing extent -> 3-D fallback path.
    p = jax.random.normal(k6, (2, 3, 5, 7), dtype=jnp.float32)
    q = jax.random.normal(k7, (2, 5, 5, 7), dtype=jnp.float32)
    y3 = pallas_concat([p, q], dimension=1)
    assert bool(jnp.array_equal(y3, jnp.concatenate([p, q], axis=1))), "fallback mismatch"

    # 4) Batch-1, large lane-aligned spatial extent -> 4-D tiled/pipelined path.
    u = jax.random.normal(k8, (1, 16, 64, 128), dtype=jnp.float32)
    v = jax.random.normal(k9, (1, 16, 64, 128), dtype=jnp.float32)
    y4 = pallas_concat([u, v], dimension=1)
    assert bool(jnp.array_equal(y4, jnp.concatenate([u, v], axis=1))), "4D-path mismatch"

    # 5) Pure HBM->HBM DMA path (normally reserved for very large tensors).
    y5 = pallas_concat([x1, x2, x3], dimension=1, force_dma=True)
    assert bool(jnp.array_equal(y5, ref)), "DMA-path mismatch"

    print("KERNEL_OK")
</pallas_src>

<mosaic_0001>
module attributes {stable_mosaic.version = 11 : i64} {
  func.func @_concat_lanes_kernel(%arg0: i32, %arg1: memref<2x1024xf32, #tpu.memory_space<vmem>>, %arg2: memref<2x1536xf32, #tpu.memory_space<vmem>>, %arg3: memref<2x512xf32, #tpu.memory_space<vmem>>, %arg4: memref<2x3072xf32, #tpu.memory_space<vmem>>) attributes {dimension_semantics = [#tpu.dimension_semantics<parallel>], iteration_bounds = array<i64: 1>, scalar_prefetch = 0 : i64, scratch_operands = 0 : i64, tpu.core_type = #tpu.core_type<tc>, window_params = [{transform_indices = @transform_0, window_bounds = array<i64: 2, 1024>}, {transform_indices = @transform_1, window_bounds = array<i64: 2, 1536>}, {transform_indices = @transform_2, window_bounds = array<i64: 2, 512>}, {transform_indices = @transform_3, window_bounds = array<i64: 2, 3072>}]} {
    %c0 = arith.constant 0 : index
    %c0_0 = arith.constant 0 : index
    %0 = vector.load %arg1[%c0, %c0_0] : memref<2x1024xf32, #tpu.memory_space<vmem>>, vector<2x1024xf32>
    %c0_1 = arith.constant 0 : index
    %c0_2 = arith.constant 0 : index
    %1 = vector.load %arg4[%c0_1, %c0_2] : memref<2x3072xf32, #tpu.memory_space<vmem>>, vector<2x1024xf32>
    tpu.vector_store %arg4[%c0_1, %c0_2], %0 {strides = array<i32>} : memref<2x3072xf32, #tpu.memory_space<vmem>>, vector<2x1024xf32>,
    %c0_3 = arith.constant 0 : index
    %c0_4 = arith.constant 0 : index
    %2 = vector.load %arg2[%c0_3, %c0_4] : memref<2x1536xf32, #tpu.memory_space<vmem>>, vector<2x1536xf32>
    %c0_5 = arith.constant 0 : index
    %c1024 = arith.constant 1024 : index
    %3 = vector.load %arg4[%c0_5, %c1024] : memref<2x3072xf32, #tpu.memory_space<vmem>>, vector<2x1536xf32>
    tpu.vector_store %arg4[%c0_5, %c1024], %2 {strides = array<i32>} : memref<2x3072xf32, #tpu.memory_space<vmem>>, vector<2x1536xf32>,
    %c0_6 = arith.constant 0 : index
    %c0_7 = arith.constant 0 : index
    %4 = vector.load %arg3[%c0_6, %c0_7] : memref<2x512xf32, #tpu.memory_space<vmem>>, vector<2x512xf32>
    %c0_8 = arith.constant 0 : index
    %c2560 = arith.constant 2560 : index
    %5 = vector.load %arg4[%c0_8, %c2560] : memref<2x3072xf32, #tpu.memory_space<vmem>>, vector<2x512xf32>
    tpu.vector_store %arg4[%c0_8, %c2560], %4 {strides = array<i32>} : memref<2x3072xf32, #tpu.memory_space<vmem>>, vector<2x512xf32>,
    return
  }
  func.func @transform_0(%arg0: i32) -> (i32, i32) {
    %c0_i32 = arith.constant 0 : i32
    %c0_i32_0 = arith.constant 0 : i32
    return %arg0, %c0_i32 : i32, i32
  }
  func.func @transform_1(%arg0: i32) -> (i32, i32) {
    %c0_i32 = arith.constant 0 : i32
    %c0_i32_0 = arith.constant 0 : i32
    return %arg0, %c0_i32 : i32, i32
  }
  func.func @transform_2(%arg0: i32) -> (i32, i32) {
    %c0_i32 = arith.constant 0 : i32
    %c0_i32_0 = arith.constant 0 : i32
    return %arg0, %c0_i32 : i32, i32
  }
  func.func @transform_3(%arg0: i32) -> (i32, i32) {
    %c0_i32 = arith.constant 0 : i32
    %c0_i32_0 = arith.constant 0 : i32
    return %arg0, %c0_i32 : i32, i32
  }
}

</mosaic_0001>

<llo_original>
// kernel: tpu_custom_call.1
$region0: #{tpu_custom_call.1}
  #allocation0 [shape = 'u32[]', space=smem, size = 0x4, offset = 0x4, fixed_abs, tag = 'smem constant byte address 0x4 - core index']
  #allocation1 [shape = 'u32[144,128]{1,0:T(1,128)}', space=vmem, size = 0x12000, scoped, tag = 'internal scratch']
  %s0 = inlined_call_operand.hbm [shape: f32[2,1024], index: 0, kind: input, shape index: {}]
  %s1 = inlined_call_operand.hbm [shape: f32[2,1536], index: 1, kind: input, shape index: {}]
  %s2 = inlined_call_operand.hbm [shape: f32[2,512], index: 2, kind: input, shape index: {}]
  %s3 = inlined_call_operand.hbm [shape: f32[2,3072], index: 3, kind: output, shape index: {}]
  %s4 = sld [smem:[#allocation0]]
  $region34: #{tpu_custom_call.1} parent=0
    _
  %s6 = ssub.s32 1, %s4
  %s7 = scalar_select 0, %s6, %s4
  $region1: #{tpu_custom_call.1} parent=0
    #allocation2 [shape = 'u8[8192]{0}', space=vmem, size = 0x2000, scoped, tag = 'input window, operand 0, single buffered']
    #allocation3 [shape = 's32[1]{0}', space=sflag, size = 0x4, scoped, tag = 'scoped memory for tpu_custom_call.1']
    #allocation4 [shape = 's32[1]{0}', space=sflag, size = 0x4, scoped, tag = 'scoped memory for tpu_custom_call.1']
    #allocation5 [shape = 'u8[12288]{0}', space=vmem, size = 0x3000, scoped, tag = 'input window, operand 1, single buffered']
    #allocation6 [shape = 's32[1]{0}', space=sflag, size = 0x4, scoped, tag = 'scoped memory for tpu_custom_call.1']
    #allocation7 [shape = 'u8[4096]{0}', space=vmem, size = 0x1000, scoped, tag = 'input window, operand 2, single buffered']
    #allocation8 [shape = 'u8[24576]{0}', space=vmem, size = 0x6000, scoped, tag = 'output window, operand 0, single buffered']
    %8 = vsyncpa [#allocation3], 0
    %9 = vsyncpa [#allocation6], 0
    %10 = vsyncpa [#allocation4], 0
    // Predicated region
    $region2: #{tpu_custom_call.1} parent=1 // pred_check
      _
    $region3: #{tpu_custom_call.1} parent=1 // pred_check_branch
      %12 = sbr.rel (0) target = $region5
    $region4: #{tpu_custom_call.1} parent=1 // pred_region
      %s14 = ssub.s32 256, 256
      %15 = vsyncadd [#allocation3], %s14
      %s17 = sshll.u32 [#allocation2], 4
      %s18 = int_to_ptr.vmem [resolvable:$true] %s17
      %20 = dma.hbm_to_vmem [thread:$0]  %s0, 256, %s18, [#allocation3]
    $region5: #{tpu_custom_call.1} parent=1 // pred_fallthru
      _
    // Predicated region
    $region6: #{tpu_custom_call.1} parent=1 // pred_check
      _
    $region7: #{tpu_custom_call.1} parent=1 // pred_check_branch
      %22 = sbr.rel (0) target = $region9
    $region8: #{tpu_custom_call.1} parent=1 // pred_region
      %s24 = ssub.s32 384, 384
      %25 = vsyncadd [#allocation6], %s24
      %s27 = sshll.u32 [#allocation5], 4
      %s28 = int_to_ptr.vmem [resolvable:$true] %s27
      %30 = dma.hbm_to_vmem [thread:$0]  %s1, 384, %s28, [#allocation6]
    $region9: #{tpu_custom_call.1} parent=1 // pred_fallthru
      _
    // Predicated region
    $region10: #{tpu_custom_call.1} parent=1 // pred_check
      _
    $region11: #{tpu_custom_call.1} parent=1 // pred_check_branch
      %32 = sbr.rel (0) target = $region13
    $region12: #{tpu_custom_call.1} parent=1 // pred_region
      %s34 = ssub.s32 128, 128
      %35 = vsyncadd [#allocation6], %s34
      %s37 = sshll.u32 [#allocation7], 4
      %s38 = int_to_ptr.vmem [resolvable:$true] %s37
      %40 = dma.hbm_to_vmem [thread:$0]  %s2, 128, %s38, [#allocation6]
    $region13: #{tpu_custom_call.1} parent=1 // pred_fallthru
      _
    // Predicated region
    $region14: #{tpu_custom_call.1} parent=1 // pred_check
      _
    $region15: #{tpu_custom_call.1} parent=1 // pred_check_branch
      %42 = sbr.rel (0) target = $region17
    $region16: #{tpu_custom_call.1} parent=1 // pred_region
      %43 = dma.done [#allocation3], 256
    $region17: #{tpu_custom_call.1} parent=1 // pred_fallthru
      _
    // Predicated region
    $region18: #{tpu_custom_call.1} parent=1 // pred_check
      _
    $region19: #{tpu_custom_call.1} parent=1 // pred_check_branch
      %45 = sbr.rel (0) target = $region21
    $region20: #{tpu_custom_call.1} parent=1 // pred_region
      %46 = dma.done [#allocation6], 384
    $region21: #{tpu_custom_call.1} parent=1 // pred_fallthru
      _
    // Predicated region
    $region22: #{tpu_custom_call.1} parent=1 // pred_check
      _
    $region23: #{tpu_custom_call.1} parent=1 // pred_check_branch
      %48 = sbr.rel (0) target = $region25
    $region24: #{tpu_custom_call.1} parent=1 // pred_region
      %49 = dma.done [#allocation6], 128
    $region25: #{tpu_custom_call.1} parent=1 // pred_fallthru
      _
    %v50 = vld [vmem:[#allocation2] sm:$0xff]
    %v51 = vld [vmem:[#allocation2 + $0x8] sm:$0xff]
    %52 = vst [vmem:[#allocation8] sm:$0xff] %v50
    %53 = vst [vmem:[#allocation8 + $0x8] sm:$0xff] %v51
    %v54 = vld [vmem:[#allocation5] sm:$0xff]
    %v55 = vld [vmem:[#allocation5 + $0x8] sm:$0xff]
    %v56 = vld [vmem:[#allocation5 + $0x10] sm:$0xff]
    %57 = vst [vmem:[#allocation8 + $0x10] sm:$0xff] %v54
    %58 = vst [vmem:[#allocation8 + $0x18] sm:$0xff] %v55
    %59 = vst [vmem:[#allocation8 + $0x20] sm:$0xff] %v56
    %v60 = vld [vmem:[#allocation7] sm:$0xff]
    %61 = vst [vmem:[#allocation8 + $0x28] sm:$0xff] %v60
    // Predicated region
    $region26: #{tpu_custom_call.1} parent=1 // pred_check
      _
    $region27: #{tpu_custom_call.1} parent=1 // pred_check_branch
      %63 = sbr.rel (0) target = $region29
    $region28: #{tpu_custom_call.1} parent=1 // pred_region
      %s65 = ssub.s32 768, 768
      %66 = vsyncadd [#allocation4], %s65
      %s68 = sshll.u32 [#allocation8], 4
      %s69 = int_to_ptr.vmem [resolvable:$true] %s68
      %71 = dma.vmem_to_hbm [thread:$0]  %s69, 768, %s3, [#allocation4]
    $region29: #{tpu_custom_call.1} parent=1 // pred_fallthru
      _
    // Predicated region
    $region30: #{tpu_custom_call.1} parent=1 // pred_check
      _
    $region31: #{tpu_custom_call.1} parent=1 // pred_check_branch
      %73 = sbr.rel (0) target = $region33
    $region32: #{tpu_custom_call.1} parent=1 // pred_region
      %74 = dma.done [#allocation4], 768
    $region33: #{tpu_custom_call.1} parent=1 // pred_fallthru
      _
    %75 = vsyncpa [#allocation3], 1
    %76 = vsyncpa [#allocation6], 1
    %77 = vsyncpa [#allocation4], 1

</llo_original>
